<compile_context>
chip_gen: v7x
topology: tpu7x:2x2x1
jax: 0.10.0
libtpu: 0.0.40
codegen_flags: <defaults>
</compile_context>

<pallas_src>
import functools

import jax
import jax.numpy as jnp
from jax.experimental import pallas as pl
from jax.experimental.pallas import tpu as pltpu


def _round_up(x, m):
    return ((x + m - 1) // m) * m


def _stft_mag_kernel(chunks_ref, w_ref, out_ref, *, tm, hop, r, fp, blk_rows):
    # chunks_ref: (n_chunks_pad, hop)  full per-batch hop-chunked padded signal (resident)
    # w_ref:      (nfft, 2*fp)         packed, windowed [cos | sin] DFT matrix (resident)
    # out_ref:    (tm, fp)             magnitude tile for frames [m*tm, (m+1)*tm)
    base = pl.multiple_of(pl.program_id(1) * tm, tm)
    # One aligned read covering this tile's frames plus the nfft-hop overlap tail.
    blk = chunks_ref[pl.ds(base, blk_rows), :]                 # (blk_rows, hop)
    acc = None
    for j in range(r):                                         # static unroll, r = nfft // hop
        xj = blk[j:j + tm, :]                                  # shifted chunk rows = frame cols j*hop..
        wj = w_ref[pl.ds(j * hop, hop), :]                     # (hop, 2*fp)
        d = jnp.dot(xj, wj, preferred_element_type=jnp.float32)
        acc = d if acc is None else acc + d                    # (tm, 2*fp) = [re | im]
    re = acc[:, :fp]
    im = acc[:, fp:]
    out_ref[...] = jnp.sqrt(re * re + im * im)


def stft_mag(x, nfft=256, hop=64, frame_tile=None):
    """Pallas implementation of STFTMag.forward (x: (B, T) float32)."""
    if nfft % hop != 0:
        raise ValueError("this kernel requires hop to divide nfft")
    x = x.astype(jnp.float32)
    B, T = x.shape
    pad = nfft // 2
    R = nfft // hop
    F_ = nfft // 2 + 1
    FP = _round_up(F_, 128)                    # lane-dense (zero-padded) frequency width
    n_frames = 1 + T // hop

    # Frame (M) tiling: 8-aligned, capped at 256 rows (full MXU M on v6e/v7x, 2x128 on v5e).
    TM = frame_tile or min(256, _round_up(n_frames, 8))
    TM = _round_up(TM, 8)
    m_tiles = pl.cdiv(n_frames, TM)
    frames_pad = m_tiles * TM
    blk_rows = _round_up(TM + R - 1, 8)        # per-tile chunk rows incl. overlap
    n_chunks_pad = frames_pad + (blk_rows - TM)  # keeps every in-kernel read in bounds

    # --- XLA glue: center reflect pad + hop-chunk reshape (no 4x framing gather) ----
    xp = jnp.pad(x, ((0, 0), (pad, pad)), mode="reflect")      # (B, T + nfft)
    n_chunks_used = n_frames + R - 1
    xc = xp[:, :n_chunks_used * hop].reshape(B, n_chunks_used, hop)
    if n_chunks_pad > n_chunks_used:
        xc = jnp.pad(xc, ((0, 0), (0, n_chunks_pad - n_chunks_used), (0, 0)))

    # --- deterministic "parameters": hann window folded into packed DFT matrix ------
    n = jnp.arange(nfft, dtype=jnp.float32)
    window = 0.5 * (1.0 - jnp.cos(2.0 * jnp.pi * n / nfft))    # torch.hann_window (periodic)
    k = jnp.arange(FP, dtype=jnp.float32)
    valid = (jnp.arange(FP) < F_).astype(jnp.float32)          # zero the padded bins
    ang = 2.0 * jnp.pi * jnp.outer(n, k) / nfft                # (nfft, FP)
    cos_mat = window[:, None] * jnp.cos(ang) * valid[None, :]
    sin_mat = window[:, None] * jnp.sin(ang) * valid[None, :]  # sign irrelevant for |.|
    w_packed = jnp.concatenate([cos_mat, sin_mat], axis=1).astype(jnp.float32)  # (nfft, 2*FP)

    cost = pl.CostEstimate(
        flops=2 * B * frames_pad * nfft * 2 * FP,
        transcendentals=0,
        bytes_accessed=4 * (B * n_chunks_pad * hop + nfft * 2 * FP + B * frames_pad * FP),
    )

    kernel = functools.partial(
        _stft_mag_kernel, tm=TM, hop=hop, r=R, fp=FP, blk_rows=blk_rows)

    out = pl.pallas_call(
        kernel,
        out_shape=jax.ShapeDtypeStruct((B, frames_pad, FP), jnp.float32),
        grid=(B, m_tiles),
        in_specs=[
            # full per-batch chunked signal, resident across the frame-tile axis
            pl.BlockSpec((None, n_chunks_pad, hop), lambda b, m: (b, 0, 0)),
            # packed DFT weights, resident across the whole grid
            pl.BlockSpec((nfft, 2 * FP), lambda b, m: (0, 0)),
        ],
        out_specs=pl.BlockSpec((None, TM, FP), lambda b, m: (b, m, 0)),
        compiler_params=pltpu.CompilerParams(
            dimension_semantics=("parallel", "parallel")),
        cost_estimate=cost,
    )(xc, w_packed)

    # Match torch.stft output ordering: (B, freq_bins, n_frames).
    # TODO(synk): drop this slice+transpose if the consumer can take (B, n_frames, F).
    return jnp.transpose(out[:, :n_frames, :F_], (0, 2, 1))


def _reference(x, nfft=256, hop=64):
    # Pure-JAX reference (rfft) used only for a correctness sanity check.
    x = x.astype(jnp.float32)
    B, T = x.shape
    pad = nfft // 2
    xp = jnp.pad(x, ((0, 0), (pad, pad)), mode="reflect")
    n_frames = 1 + T // hop
    idx = jnp.arange(n_frames)[:, None] * hop + jnp.arange(nfft)[None, :]
    frames = xp[:, idx]
    n = jnp.arange(nfft, dtype=jnp.float32)
    window = 0.5 * (1.0 - jnp.cos(2.0 * jnp.pi * n / nfft))
    spec = jnp.fft.rfft(frames * window[None, None, :], n=nfft, axis=-1)
    return jnp.transpose(jnp.abs(spec), (0, 2, 1)).astype(jnp.float32)


if __name__ == "__main__":
    # Small shapes consistent with the module: nfft=256, hop=64, B=2, T=512
    # -> output (2, 129, 9)
    nfft, hop = 256, 64
    B, T = 2, 512
    key = jax.random.PRNGKey(0)
    x = jax.random.normal(key, (B, T), dtype=jnp.float32)

    out = stft_mag(x, nfft=nfft, hop=hop)
    out = jax.block_until_ready(out)

    ref = _reference(x, nfft=nfft, hop=hop)
    assert out.shape == (B, nfft // 2 + 1, 1 + T // hop), out.shape
    assert jnp.allclose(out, ref, rtol=1e-3, atol=1e-2), float(jnp.max(jnp.abs(out - ref)))

    print("KERNEL_OK")
</pallas_src>

<mosaic_0001>
module attributes {stable_mosaic.version = 11 : i64} {
  func.func @_stft_mag_kernel(%arg0: i32, %arg1: i32, %arg2: memref<1x24x64xf32, #tpu.memory_space<vmem>>, %arg3: memref<256x512xf32, #tpu.memory_space<vmem>>, %arg4: memref<1x16x256xf32, #tpu.memory_space<vmem>>) attributes {dimension_semantics = [#tpu.dimension_semantics<parallel>, #tpu.dimension_semantics<parallel>], iteration_bounds = array<i64: 2, 1>, scalar_prefetch = 0 : i64, scratch_operands = 0 : i64, tpu.core_type = #tpu.core_type<tc>, window_params = [{transform_indices = @transform_0, window_bounds = array<i64: 1, 24, 64>}, {pipeline_mode = #tpu.pipeline_mode<synchronous>, transform_indices = @transform_1, window_bounds = array<i64: 256, 512>}, {transform_indices = @transform_2, window_bounds = array<i64: 1, 16, 256>}]} {
    %c16_i32 = arith.constant 16 : i32
    %0 = arith.muli %arg1, %c16_i32 : i32
    %1 = tpu.assume_multiple %0, 16 : i32
    %c0 = arith.constant 0 : index
    %2 = arith.index_cast %1 : i32 to index
    %c0_0 = arith.constant 0 : index
    %3 = vector.load %arg2[%c0, %2, %c0_0] : memref<1x24x64xf32, #tpu.memory_space<vmem>>, vector<1x24x64xf32>
    %4 = vector.shape_cast %3 : vector<1x24x64xf32> to vector<24x64xf32>
    %5 = vector.extract_strided_slice %4 {offsets = [0, 0], sizes = [16, 64], strides = [1, 1]} : vector<24x64xf32> to vector<16x64xf32>
    %c0_1 = arith.constant 0 : index
    %c0_2 = arith.constant 0 : index
    %6 = vector.load %arg3[%c0_1, %c0_2] : memref<256x512xf32, #tpu.memory_space<vmem>>, vector<64x512xf32>
    %cst = arith.constant dense<0.000000e+00> : vector<16x512xf32>
    %7 = tpu.matmul %5, %6, %cst {dimension_numbers = #tpu.dot_dimension_numbers<[1], [0], [0], [1], [0, 0, 1, 1], [], []>} : vector<16x64xf32>, vector<64x512xf32>, vector<16x512xf32> -> vector<16x512xf32>
    %8 = vector.extract_strided_slice %4 {offsets = [1, 0], sizes = [16, 64], strides = [1, 1]} : vector<24x64xf32> to vector<16x64xf32>
    %c64 = arith.constant 64 : index
    %c0_3 = arith.constant 0 : index
    %9 = vector.load %arg3[%c64, %c0_3] : memref<256x512xf32, #tpu.memory_space<vmem>>, vector<64x512xf32>
    %cst_4 = arith.constant dense<0.000000e+00> : vector<16x512xf32>
    %10 = tpu.matmul %8, %9, %cst_4 {dimension_numbers = #tpu.dot_dimension_numbers<[1], [0], [0], [1], [0, 0, 1, 1], [], []>} : vector<16x64xf32>, vector<64x512xf32>, vector<16x512xf32> -> vector<16x512xf32>
    %11 = arith.addf %7, %10 : vector<16x512xf32>
    %12 = vector.extract_strided_slice %4 {offsets = [2, 0], sizes = [16, 64], strides = [1, 1]} : vector<24x64xf32> to vector<16x64xf32>
    %c128 = arith.constant 128 : index
    %c0_5 = arith.constant 0 : index
    %13 = vector.load %arg3[%c128, %c0_5] : memref<256x512xf32, #tpu.memory_space<vmem>>, vector<64x512xf32>
    %cst_6 = arith.constant dense<0.000000e+00> : vector<16x512xf32>
    %14 = tpu.matmul %12, %13, %cst_6 {dimension_numbers = #tpu.dot_dimension_numbers<[1], [0], [0], [1], [0, 0, 1, 1], [], []>} : vector<16x64xf32>, vector<64x512xf32>, vector<16x512xf32> -> vector<16x512xf32>
    %15 = arith.addf %11, %14 : vector<16x512xf32>
    %16 = vector.extract_strided_slice %4 {offsets = [3, 0], sizes = [16, 64], strides = [1, 1]} : vector<24x64xf32> to vector<16x64xf32>
    %c192 = arith.constant 192 : index
    %c0_7 = arith.constant 0 : index
    %17 = vector.load %arg3[%c192, %c0_7] : memref<256x512xf32, #tpu.memory_space<vmem>>, vector<64x512xf32>
    %cst_8 = arith.constant dense<0.000000e+00> : vector<16x512xf32>
    %18 = tpu.matmul %16, %17, %cst_8 {dimension_numbers = #tpu.dot_dimension_numbers<[1], [0], [0], [1], [0, 0, 1, 1], [], []>} : vector<16x64xf32>, vector<64x512xf32>, vector<16x512xf32> -> vector<16x512xf32>
    %19 = arith.addf %15, %18 : vector<16x512xf32>
    %20 = vector.extract_strided_slice %19 {offsets = [0, 0], sizes = [16, 256], strides = [1, 1]} : vector<16x512xf32> to vector<16x256xf32>
    %21 = vector.extract_strided_slice %19 {offsets = [0, 256], sizes = [16, 256], strides = [1, 1]} : vector<16x512xf32> to vector<16x256xf32>
    %22 = arith.mulf %20, %20 : vector<16x256xf32>
    %23 = arith.mulf %21, %21 : vector<16x256xf32>
    %24 = arith.addf %22, %23 : vector<16x256xf32>
    %25 = math.sqrt %24 : vector<16x256xf32>
    %c0_9 = arith.constant 0 : index
    %c0_10 = arith.constant 0 : index
    %c0_11 = arith.constant 0 : index
    %26 = vector.load %arg4[%c0_9, %c0_10, %c0_11] : memref<1x16x256xf32, #tpu.memory_space<vmem>>, vector<1x16x256xf32>
    %27 = vector.shape_cast %26 : vector<1x16x256xf32> to vector<16x256xf32>
    %28 = vector.shape_cast %25 : vector<16x256xf32> to vector<1x16x256xf32>
    tpu.vector_store %arg4[%c0_9, %c0_10, %c0_11], %28 {strides = array<i32>} : memref<1x16x256xf32, #tpu.memory_space<vmem>>, vector<1x16x256xf32>,
    return
  }
  func.func @transform_0(%arg0: i32, %arg1: i32) -> (i32, i32, i32) {
    %c0_i32 = arith.constant 0 : i32
    %c0_i32_0 = arith.constant 0 : i32
    %c0_i32_1 = arith.constant 0 : i32
    return %arg0, %c0_i32, %c0_i32_0 : i32, i32, i32
  }
  func.func @transform_1(%arg0: i32, %arg1: i32) -> (i32, i32) {
    %c0_i32 = arith.constant 0 : i32
    %c0_i32_0 = arith.constant 0 : i32
    %c0_i32_1 = arith.constant 0 : i32
    return %c0_i32, %c0_i32_0 : i32, i32
  }
  func.func @transform_2(%arg0: i32, %arg1: i32) -> (i32, i32, i32) {
    %c0_i32 = arith.constant 0 : i32
    %c0_i32_0 = arith.constant 0 : i32
    return %arg0, %arg1, %c0_i32 : i32, i32, i32
  }
}

</mosaic_0001>

<llo_original>
// kernel: tpu_custom_call.1
$region0: #{tpu_custom_call.1}
  #allocation0 [shape = 'u32[]', space=smem, size = 0x4, offset = 0x4, fixed_abs, tag = 'smem constant byte address 0x4 - core index']
  #allocation1 [shape = 'u32[144,128]{1,0:T(1,128)}', space=vmem, size = 0x12000, scoped, tag = 'internal scratch']
  %s0 = inlined_call_operand.hbm [shape: f32[2,24,64], index: 0, kind: input, shape index: {}]
  %s1 = inlined_call_operand.hbm [shape: f32[256,512], index: 1, kind: input, shape index: {}]
  %s2 = inlined_call_operand.hbm [shape: f32[2,16,256], index: 2, kind: output, shape index: {}]
  %s3 = sld [smem:[#allocation0]]
  $region49: #{tpu_custom_call.1} parent=0
    _
  %s5 = ssub.s32 1, %s3
  %s6 = scalar_select 0, %s5, %s3
  $region1: #{tpu_custom_call.1} parent=0
    #allocation2 [shape = 'u8[24576]{0}', space=vmem, size = 0x6000, scoped, tag = 'input window, operand 0']
    #allocation3 [shape = 's32[2]{0}', space=sflag, size = 0x8, scoped, tag = 'scoped memory for tpu_custom_call.1']
    #allocation4 [shape = 's32[2]{0}', space=sflag, size = 0x8, scoped, tag = 'scoped memory for tpu_custom_call.1']
    #allocation5 [shape = 'u8[524288]{0}', space=vmem, size = 0x80000, scoped, tag = 'input window, operand 1, single buffered']
    #allocation6 [shape = 's32[1]{0}', space=sflag, size = 0x4, scoped, tag = 'scoped memory for tpu_custom_call.1']
    #allocation7 [shape = 'u8[32768]{0}', space=vmem, size = 0x8000, scoped, tag = 'output window, operand 0']
    %7 = vsyncpa [#allocation3], 0
    %s8 = scalar_lea.sflag [#allocation3], 1
    %9 = vsyncpa %s8, 0
    %10 = vsyncpa [#allocation6], 0
    %11 = vsyncpa [#allocation4], 0
    %s12 = scalar_lea.sflag [#allocation4], 1
    %13 = vsyncpa %s12, 0
    loop: start=0, step=1, limit=4
    $region2: #{tpu_custom_call.1} parent=1 // loop_pre_header
      _
    $region3: #{tpu_custom_call.1} parent=1 // loop_header
      %s15 = sphi 0, %s19
      %p16 = scmp.ge.s32.totalorder %s15, 4
      %s22 = sphi 0, %s34
      %s23 = sphi 0, %s30
      %s24 = sphi 0, %s22
      %s25 = sphi 0, %s23
      %s26 = sphi 0, %s24
      %s27 = sphi 0, %s25
      %s37 = sphi 0, %s39
      %s40 = sphi 0, %s37
      %s41 = sphi 0, %s40
      %s57 = sphi 0, %s41
      %s61 = sphi 0, %s61
      %s63 = sphi 0, %s61
      %s64 = sphi 0, %s63
      %s78 = sphi 0, %s64
      %s86 = sphi 0, %s88
      %s89 = sphi 0, %s86
      %s90 = sphi 0, %s89
      %s106 = sphi 0, %s90
    $region4: #{tpu_custom_call.1} parent=1 // loop_header_branch
      %18 = sbr.rel (%p16) target = $region8
    $region5: #{tpu_custom_call.1} parent=1 // loop_body
      %s20 = ssub.s32 %s15, 1
      %s21 = ssub.s32 %s15, 2
      %s28 = sadd.s32 1, %s23
      %p29 = scmp.ge.s32.totalorder %s28, 1
      %s30 = scalar_select %p29, 0, %s28
      %s31 = sadd.s32 1, %s22
      %s32 = scalar_select %p29, %s31, %s22
      %p33 = scmp.ge.s32.totalorder %s32, 2
      %s34 = scalar_select %p33, 0, %s32
      %s35 = ssub.s32 %s22, %s34
      %p36 = scmp.eq.s32.totalorder %s35, 0
      %s38 = sadd.s32 %s37, 1
      %s39 = scalar_select %p36, %s37, %s38
      %p42 = pneg %p36
      %p43 = scmp.eq.s32.totalorder %s15, 1
      %p44 = por %p42, %p43
      %p45 = scmp.ne.s32.totalorder %s37, %s40
      %p46 = scmp.eq.s32.totalorder %s15, 0
      %p47 = por %p45, %p46
      %p48 = scmp.ne.s32.totalorder %s37, %s40
      %p49 = scmp.eq.s32.totalorder %s20, 1
      %p50 = por %p48, %p49
      %p51 = scmp.ne.s32.totalorder %s40, %s41
      %p52 = scmp.eq.s32.totalorder %s20, 0
      %p53 = por %p51, %p52
      %p54 = scmp.ne.s32.totalorder %s40, %s41
      %p55 = scmp.eq.s32.totalorder %s21, 1
      %p56 = por %p54, %p55
      %p58 = scmp.ne.s32.totalorder %s41, %s57
      %p59 = scmp.eq.s32.totalorder %s21, 0
      %p60 = por %p58, %p59
      %s62 = sadd.s32 %s61, 1
      %p65 = scmp.eq.s32.totalorder %s15, 1
      %p66 = scmp.ne.s32.totalorder %s61, %s63
      %p67 = scmp.eq.s32.totalorder %s15, 0
      %p68 = por %p66, %p67
      %p69 = scmp.ne.s32.totalorder %s61, %s63
      %p70 = scmp.eq.s32.totalorder %s20, 1
      %p71 = por %p69, %p70
      %p72 = scmp.ne.s32.totalorder %s63, %s64
      %p73 = scmp.eq.s32.totalorder %s20, 0
      %p74 = por %p72, %p73
      %p75 = scmp.ne.s32.totalorder %s63, %s64
      %p76 = scmp.eq.s32.totalorder %s21, 1
      %p77 = por %p75, %p76
      %p79 = scmp.ne.s32.totalorder %s64, %s78
      %p80 = scmp.eq.s32.totalorder %s21, 0
      %p81 = por %p79, %p80
      %s82 = ssub.s32 %s22, %s34
      %s83 = ssub.s32 %s23, %s30
      %s84 = sor.u32 %s82, %s83
      %p85 = scmp.eq.s32.totalorder %s84, 0
      %s87 = sadd.s32 %s86, 1
      %s88 = scalar_select %p85, %s86, %s87
      %p91 = pneg %p85
      %p92 = scmp.eq.s32.totalorder %s15, 1
      %p93 = por %p91, %p92
      %p94 = scmp.ne.s32.totalorder %s86, %s89
      %p95 = scmp.eq.s32.totalorder %s15, 0
      %p96 = por %p94, %p95
      %p97 = scmp.ne.s32.totalorder %s86, %s89
      %p98 = scmp.eq.s32.totalorder %s20, 1
      %p99 = por %p97, %p98
      %p100 = scmp.ne.s32.totalorder %s89, %s90
      %p101 = scmp.eq.s32.totalorder %s20, 0
      %p102 = por %p100, %p101
      %p103 = scmp.ne.s32.totalorder %s89, %s90
      %p104 = scmp.eq.s32.totalorder %s21, 1
      %p105 = por %p103, %p104
      %p107 = scmp.ne.s32.totalorder %s90, %s106
      %p108 = scmp.eq.s32.totalorder %s21, 0
      %p109 = por %p107, %p108
      %p110 = scmp.le.s32.totalorder 1, %s15
      %p111 = scmp.lt.s32.totalorder %s15, 3
      %p112 = pnand %p110, %p111
      %p113 = pneg %p112
      // Predicated region
      $region9: #{tpu_custom_call.1} parent=5 // pred_check
        _
      $region10: #{tpu_custom_call.1} parent=5 // pred_check_branch
        %115 = sbr.rel (%p112) target = $region12
      $region11: #{tpu_custom_call.1} parent=5 // pred_region
        %s116 = ssub.s32 %s15, 1
        // Predicated region
        $region13: #{tpu_custom_call.1} parent=11 // pred_check
          %p117 = pneg %p74
        $region14: #{tpu_custom_call.1} parent=11 // pred_check_branch
          %119 = sbr.rel (%p117) target = $region16
        $region15: #{tpu_custom_call.1} parent=11 // pred_region
          %s121 = ssub.s32 16384, 16384
          %122 = vsyncadd [#allocation6], %s121
          %s123 = sshll.u32 [#allocation5], 4
          %s124 = int_to_ptr.vmem [resolvable:$true] %s123
          %129 = dma.hbm_to_vmem [thread:$0]  %s1, 16384, %s124, [#allocation6], 512, 512, 32
        $region16: #{tpu_custom_call.1} parent=11 // pred_fallthru
          _
      $region12: #{tpu_custom_call.1} parent=5 // pred_fallthru
        _
      %p130 = scmp.lt.s32.totalorder %s15, 2
      // Predicated region
      $region17: #{tpu_custom_call.1} parent=5 // pred_check
        %p131 = pneg %p130
      $region18: #{tpu_custom_call.1} parent=5 // pred_check_branch
        %133 = sbr.rel (%p131) target = $region20
      $region19: #{tpu_custom_call.1} parent=5 // pred_region
        // Predicated region
        $region21: #{tpu_custom_call.1} parent=19 // pred_check
          %p134 = pneg %p47
        $region22: #{tpu_custom_call.1} parent=19 // pred_check_branch
          %136 = sbr.rel (%p134) target = $region24
        $region23: #{tpu_custom_call.1} parent=19 // pred_region
          %s137 = sand.u32 %s37, 1
          %s138 = scalar_lea.sflag [#allocation3], %s137
          %s139 = sand.u32 %s37, 1
          %s140 = smul.addr %s139, 24
          %s141 = scalar_lea.vmem [#allocation2], %s140
          %s143 = ssub.s32 384, 384
          %144 = vsyncadd %s138, %s143
          %s145 = smul.addr %s22, 3
          %s146 = smul.addr %s145, 128
          %s147 = scalar_lea.hbm %s0, %s146
          %s148 = sshll.u32 %s141, 4
          %s149 = int_to_ptr.vmem [resolvable:$true] %s148
          %154 = dma.hbm_to_vmem [thread:$0]  %s147, 384, %s149, %s138, 128, 128, 8
        $region24: #{tpu_custom_call.1} parent=19 // pred_fallthru
          _
      $region20: #{tpu_custom_call.1} parent=5 // pred_fallthru
        _
      %p155 = scmp.le.s32.totalorder 1, %s15
      %p156 = scmp.lt.s32.totalorder %s15, 3
      %p157 = pnand %p155, %p156
      %p158 = pneg %p157
      // Predicated region
      $region25: #{tpu_custom_call.1} parent=5 // pred_check
        _
      $region26: #{tpu_custom_call.1} parent=5 // pred_check_branch
        %160 = sbr.rel (%p157) target = $region28
      $region27: #{tpu_custom_call.1} parent=5 // pred_region
        %s161 = ssub.s32 %s15, 1
        %s162 = sand.u32 %s40, 1
        %s163 = scalar_lea.sflag [#allocation3], %s162
        %s164 = sand.u32 %s40, 1
        %s165 = smul.addr %s164, 24
        %s166 = scalar_lea.vmem [#allocation2], %s165
        // Predicated region
        $region29: #{tpu_custom_call.1} parent=27 // pred_check
          %p167 = pneg %p53
        $region30: #{tpu_custom_call.1} parent=27 // pred_check_branch
          %169 = sbr.rel (%p167) target = $region32
        $region31: #{tpu_custom_call.1} parent=27 // pred_region
          %170 = dma.done %s163, 384
        $region32: #{tpu_custom_call.1} parent=27 // pred_fallthru
          _
        // Predicated region
        $region33: #{tpu_custom_call.1} parent=27 // pred_check
          %p171 = pneg %p74
        $region34: #{tpu_custom_call.1} parent=27 // pred_check_branch
          %173 = sbr.rel (%p171) target = $region36
        $region35: #{tpu_custom_call.1} parent=27 // pred_region
          %174 = dma.done [#allocation6], 16384
        $region36: #{tpu_custom_call.1} parent=27 // pred_fallthru
          _
        %s175 = sand.u32 %s40, 1
        %s176 = scalar_lea.sflag [#allocation3], %s175
        %s177 = sand.u32 %s40, 1
        %s178 = smul.addr %s177, 24
        %s179 = scalar_lea.vmem [#allocation2], %s178
        %p180 = pneg %p53
        %p181 = pneg %p50
        %p182 = pneg %p74
        %p183 = pneg %p71
        %p184 = pneg %p102
        %p185 = pneg %p99
        %s186 = sand.u32 %s89, 1
        %s187 = scalar_lea.sflag [#allocation4], %s186
        %s188 = sand.u32 %s89, 1
        %s189 = smul.addr %s188, 32
        %s190 = scalar_lea.vmem [#allocation7], %s189
        %s191 = smul.u32 2, %s25
        %s192 = smul.u32 %s25, 16
        %s193 = scalar_lea.vmem %s166, %s192 [#allocation2]
        %v194 = vld [vmem:[%s193] sm:$0xff]
        %v195 = vld [vmem:[%s193 + $0x8] sm:$0xff]
        %v196 = vld [vmem:[%s193 + $0x10] sm:$0xff]
        %v197 = vld [vmem:[#allocation5] sm:$0xff]
        %v198 = vld [vmem:[#allocation5 + $0x8] sm:$0xff]
        %v199 = vld [vmem:[#allocation5 + $0x10] sm:$0xff]
        %v200 = vld [vmem:[#allocation5 + $0x18] sm:$0xff]
        %v201 = vld [vmem:[#allocation5 + $0x20] sm:$0xff]
        %v202 = vld [vmem:[#allocation5 + $0x28] sm:$0xff]
        %v203 = vld [vmem:[#allocation5 + $0x30] sm:$0xff]
        %v204 = vld [vmem:[#allocation5 + $0x38] sm:$0xff]
        %v205 = vld [vmem:[#allocation5 + $0x40] sm:$0xff]
        %v206 = vld [vmem:[#allocation5 + $0x48] sm:$0xff]
        %v207 = vld [vmem:[#allocation5 + $0x50] sm:$0xff]
        %v208 = vld [vmem:[#allocation5 + $0x58] sm:$0xff]
        %v209 = vld [vmem:[#allocation5 + $0x60] sm:$0xff]
        %v210 = vld [vmem:[#allocation5 + $0x68] sm:$0xff]
        %v211 = vld [vmem:[#allocation5 + $0x70] sm:$0xff]
        %v212 = vld [vmem:[#allocation5 + $0x78] sm:$0xff]
        %v213 = vld [vmem:[#allocation5 + $0x80] sm:$0xff]
        %v214 = vld [vmem:[#allocation5 + $0x88] sm:$0xff]
        %v215 = vld [vmem:[#allocation5 + $0x90] sm:$0xff]
        %v216 = vld [vmem:[#allocation5 + $0x98] sm:$0xff]
        %v217 = vld [vmem:[#allocation5 + $0xa0] sm:$0xff]
        %v218 = vld [vmem:[#allocation5 + $0xa8] sm:$0xff]
        %v219 = vld [vmem:[#allocation5 + $0xb0] sm:$0xff]
        %v220 = vld [vmem:[#allocation5 + $0xb8] sm:$0xff]
        %v221 = vld [vmem:[#allocation5 + $0xc0] sm:$0xff]
        %v222 = vld [vmem:[#allocation5 + $0xc8] sm:$0xff]
        %v223 = vld [vmem:[#allocation5 + $0xd0] sm:$0xff]
        %v224 = vld [vmem:[#allocation5 + $0xd8] sm:$0xff]
        %v225 = vld [vmem:[#allocation5 + $0xe0] sm:$0xff]
        %v226 = vld [vmem:[#allocation5 + $0xe8] sm:$0xff]
        %v227 = vld [vmem:[#allocation5 + $0xf0] sm:$0xff]
        %v228 = vld [vmem:[#allocation5 + $0xf8] sm:$0xff]
        %v229 = vld [vmem:[#allocation5 + $0x100] sm:$0xff]
        %v230 = vld [vmem:[#allocation5 + $0x108] sm:$0xff]
        %v231 = vld [vmem:[#allocation5 + $0x110] sm:$0xff]
        %v232 = vld [vmem:[#allocation5 + $0x118] sm:$0xff]
        %v233 = vld [vmem:[#allocation5 + $0x120] sm:$0xff]
        %v234 = vld [vmem:[#allocation5 + $0x128] sm:$0xff]
        %v235 = vld [vmem:[#allocation5 + $0x130] sm:$0xff]
        %v236 = vld [vmem:[#allocation5 + $0x138] sm:$0xff]
        %v237 = vld [vmem:[#allocation5 + $0x140] sm:$0xff]
        %v238 = vld [vmem:[#allocation5 + $0x148] sm:$0xff]
        %v239 = vld [vmem:[#allocation5 + $0x150] sm:$0xff]
        %v240 = vld [vmem:[#allocation5 + $0x158] sm:$0xff]
        %v241 = vld [vmem:[#allocation5 + $0x160] sm:$0xff]
        %v242 = vld [vmem:[#allocation5 + $0x168] sm:$0xff]
        %v243 = vld [vmem:[#allocation5 + $0x170] sm:$0xff]
        %v244 = vld [vmem:[#allocation5 + $0x178] sm:$0xff]
        %v245 = vld [vmem:[#allocation5 + $0x180] sm:$0xff]
        %v246 = vld [vmem:[#allocation5 + $0x188] sm:$0xff]
        %v247 = vld [vmem:[#allocation5 + $0x190] sm:$0xff]
        %v248 = vld [vmem:[#allocation5 + $0x198] sm:$0xff]
        %v249 = vld [vmem:[#allocation5 + $0x1a0] sm:$0xff]
        %v250 = vld [vmem:[#allocation5 + $0x1a8] sm:$0xff]
        %v251 = vld [vmem:[#allocation5 + $0x1b0] sm:$0xff]
        %v252 = vld [vmem:[#allocation5 + $0x1b8] sm:$0xff]
        %v253 = vld [vmem:[#allocation5 + $0x1c0] sm:$0xff]
        %v254 = vld [vmem:[#allocation5 + $0x1c8] sm:$0xff]
        %v255 = vld [vmem:[#allocation5 + $0x1d0] sm:$0xff]
        %v256 = vld [vmem:[#allocation5 + $0x1d8] sm:$0xff]
        %v257 = vld [vmem:[#allocation5 + $0x1e0] sm:$0xff]
        %v258 = vld [vmem:[#allocation5 + $0x1e8] sm:$0xff]
        %v259 = vld [vmem:[#allocation5 + $0x1f0] sm:$0xff]
        %v260 = vld [vmem:[#allocation5 + $0x1f8] sm:$0xff]
        %vm264 = vcmask 1046528
        %v265 = vrot.slane %v194, 1
        %v266 = vrot.slane %v195, 1
        %v267 = vsel %vm264, %v265, %v266
        %v268 = vrot.slane %v196, 1
        %v269 = vsel %vm264, %v266, %v268
        %vm270 = vcmask 523264
        %v271 = vsel %vm270, %v267, 0
        %v273 = vsel %vm270, %v269, 0
        %275 = vmatprep.subr.mxu0 %v230
        %276 = vmatpush1.msra.mxu0 %v229
        %277 = vmatprep.subr.mxu0 %v234
        %278 = vmatpush1.msra.mxu0 %v233
        %279 = vmatprep.subr.mxu0 %v238
        %280 = vmatpush1.msra.mxu0 %v237
        %281 = vmatprep.subr.mxu0 %v242
        %282 = vmatpush1.msra.mxu0 %v241
        %283 = vmatprep.subr.mxu0 %v246
        %284 = vmatpush1.msra.mxu0 %v245
        %285 = vmatprep.subr.mxu0 %v250
        %286 = vmatpush1.msra.mxu0 %v249
        %287 = vmatprep.subr.mxu0 %v254
        %288 = vmatpush1.msra.mxu0 %v253
        %289 = vmatprep.subr.mxu0 %v258
        %290 = vmatpush1.msra.mxu0 %v257
        %291 = vmatprep.subr.mxu0 0.0
        %292 = vmatpush1.msra.mxu0 0.0
        %293 = vmatprep.subr.mxu0 0.0
        %294 = vmatpush1.msra.mxu0 0.0
        %295 = vmatprep.subr.mxu0 0.0
        %296 = vmatpush1.msra.mxu0 0.0
        %297 = vmatprep.subr.mxu0 0.0
        %298 = vmatpush1.msra.mxu0 0.0
        %299 = vmatprep.subr.mxu0 0.0
        %300 = vmatpush1.msra.mxu0 0.0
        %301 = vmatprep.subr.mxu0 0.0
        %302 = vmatpush1.msra.mxu0 0.0
        %303 = vmatprep.subr.mxu0 0.0
        %304 = vmatpush1.msra.mxu0 0.0
        %305 = vmatprep.subr.mxu0 0.0
        %306 = vmatpush1.msra.mxu0 0.0
        %307 = vmatprep.subr.mxu0 0.0
        %308 = vmatpush1.msra.mxu0 0.0
        %309 = vmatprep.subr.mxu0 0.0
        %310 = vmatpush1.msra.mxu0 0.0
        %311 = vmatprep.subr.mxu0 0.0
        %312 = vmatpush1.msra.mxu0 0.0
        %313 = vmatprep.subr.mxu0 0.0
        %314 = vmatpush1.msra.mxu0 0.0
        %315 = vmatprep.subr.mxu0 0.0
        %316 = vmatpush1.msra.mxu0 0.0
        %317 = vmatprep.subr.mxu0 0.0
        %318 = vmatpush1.msra.mxu0 0.0
        %319 = vmatprep.subr.mxu0 0.0
        %320 = vmatpush1.msra.mxu0 0.0
        %321 = vmatprep.subr.mxu0 0.0
        %322 = vmatpush1.msra.mxu0 0.0
        %323 = vmatprep.subr.mxu0 0.0
        %324 = vmatpush1.msra.mxu0 0.0
        %325 = vmatprep.subr.mxu0 0.0
        %326 = vmatpush1.msra.mxu0 0.0
        %327 = vmatprep.subr.mxu0 0.0
        %328 = vmatpush1.msra.mxu0 0.0
        %329 = vmatprep.subr.mxu0 0.0
        %330 = vmatpush1.msra.mxu0 0.0
        %331 = vmatprep.subr.mxu0 0.0
        %332 = vmatpush1.msra.mxu0 0.0
        %333 = vmatprep.subr.mxu0 0.0
        %334 = vmatpush1.msra.mxu0 0.0
        %335 = vmatprep.subr.mxu0 0.0
        %336 = vmatpush1.msra.mxu0 0.0
        %337 = vmatprep.subr.mxu0 0.0
        %338 = vmatpush1.msra.mxu0 0.0
        %339 = vmatprep.mubr.f32.mxu0 0.0
        %340 = vmatmul.mubr.f32.gmra.mrb[0].mxu0 %v271
        %v341 = vpop.f32.mrb[0].mxu0
        %v342 = vadd.f32 0.0, %v341
        %v343 = vpop.f32.mrb[0].mxu0
        %v344 = vadd.f32 0.0, %v343
        %345 = vmatprep.mubr.f32.mxu0 0.0
        %346 = vmatmul.mubr.f32.gmra.mrb[0].mxu0 %v273
        %v347 = vpop.f32.mrb[0].mxu0
        %v348 = vadd.f32 0.0, %v347
        %v349 = vpop.f32.mrb[0].mxu0
        %v350 = vadd.f32 0.0, %v349
        %351 = vdwg.mxu0
        %352 = vmatprep.subr.mxu0 %v232
        %353 = vmatpush1.msra.mxu0 %v231
        %354 = vmatprep.subr.mxu0 %v236
        %355 = vmatpush1.msra.mxu0 %v235
        %356 = vmatprep.subr.mxu0 %v240
        %357 = vmatpush1.msra.mxu0 %v239
        %358 = vmatprep.subr.mxu0 %v244
        %359 = vmatpush1.msra.mxu0 %v243
        %360 = vmatprep.subr.mxu0 %v248
        %361 = vmatpush1.msra.mxu0 %v247
        %362 = vmatprep.subr.mxu0 %v252
        %363 = vmatpush1.msra.mxu0 %v251
        %364 = vmatprep.subr.mxu0 %v256
        %365 = vmatpush1.msra.mxu0 %v255
        %366 = vmatprep.subr.mxu0 %v260
        %367 = vmatpush1.msra.mxu0 %v259
        %368 = vmatprep.subr.mxu0 0.0
        %369 = vmatpush1.msra.mxu0 0.0
        %370 = vmatprep.subr.mxu0 0.0
        %371 = vmatpush1.msra.mxu0 0.0
        %372 = vmatprep.subr.mxu0 0.0
        %373 = vmatpush1.msra.mxu0 0.0
        %374 = vmatprep.subr.mxu0 0.0
        %375 = vmatpush1.msra.mxu0 0.0
        %376 = vmatprep.subr.mxu0 0.0
        %377 = vmatpush1.msra.mxu0 0.0
        %378 = vmatprep.subr.mxu0 0.0
        %379 = vmatpush1.msra.mxu0 0.0
        %380 = vmatprep.subr.mxu0 0.0
        %381 = vmatpush1.msra.mxu0 0.0
        %382 = vmatprep.subr.mxu0 0.0
        %383 = vmatpush1.msra.mxu0 0.0
        %384 = vmatprep.subr.mxu0 0.0
        %385 = vmatpush1.msra.mxu0 0.0
        %386 = vmatprep.subr.mxu0 0.0
        %387 = vmatpush1.msra.mxu0 0.0
        %388 = vmatprep.subr.mxu0 0.0
        %389 = vmatpush1.msra.mxu0 0.0
        %390 = vmatprep.subr.mxu0 0.0
        %391 = vmatpush1.msra.mxu0 0.0
        %392 = vmatprep.subr.mxu0 0.0
        %393 = vmatpush1.msra.mxu0 0.0
        %394 = vmatprep.subr.mxu0 0.0
        %395 = vmatpush1.msra.mxu0 0.0
        %396 = vmatprep.subr.mxu0 0.0
        %397 = vmatpush1.msra.mxu0 0.0
        %398 = vmatprep.subr.mxu0 0.0
        %399 = vmatpush1.msra.mxu0 0.0
        %400 = vmatprep.subr.mxu0 0.0
        %401 = vmatpush1.msra.mxu0 0.0
        %402 = vmatprep.subr.mxu0 0.0
        %403 = vmatpush1.msra.mxu0 0.0
        %404 = vmatprep.subr.mxu0 0.0
        %405 = vmatpush1.msra.mxu0 0.0
        %406 = vmatprep.subr.mxu0 0.0
        %407 = vmatpush1.msra.mxu0 0.0
        %408 = vmatprep.subr.mxu0 0.0
        %409 = vmatpush1.msra.mxu0 0.0
        %410 = vmatprep.subr.mxu0 0.0
        %411 = vmatpush1.msra.mxu0 0.0
        %412 = vmatprep.subr.mxu0 0.0
        %413 = vmatpush1.msra.mxu0 0.0
        %414 = vmatprep.subr.mxu0 0.0
        %415 = vmatpush1.msra.mxu0 0.0
        %416 = vmatprep.mubr.f32.mxu0 0.0
        %417 = vmatmul.mubr.f32.gmra.mrb[0].mxu0 %v271
        %v418 = vpop.f32.mrb[0].mxu0
        %v419 = vadd.f32 0.0, %v418
        %v420 = vpop.f32.mrb[0].mxu0
        %v421 = vadd.f32 0.0, %v420
        %422 = vmatprep.mubr.f32.mxu0 0.0
        %423 = vmatmul.mubr.f32.gmra.mrb[0].mxu0 %v273
        %v424 = vpop.f32.mrb[0].mxu0
        %v425 = vadd.f32 0.0, %v424
        %v426 = vpop.f32.mrb[0].mxu0
        %v427 = vadd.f32 0.0, %v426
        %428 = vdwg.mxu0
        %v429 = vsel %vm270, %v194, 0
        %v431 = vsel %vm270, %v195, 0
        %433 = vmatprep.subr.mxu0 %v198
        %434 = vmatpush1.msra.mxu0 %v197
        %435 = vmatprep.subr.mxu0 %v202
        %436 = vmatpush1.msra.mxu0 %v201
        %437 = vmatprep.subr.mxu0 %v206
        %438 = vmatpush1.msra.mxu0 %v205
        %439 = vmatprep.subr.mxu0 %v210
        %440 = vmatpush1.msra.mxu0 %v209
        %441 = vmatprep.subr.mxu0 %v214
        %442 = vmatpush1.msra.mxu0 %v213
        %443 = vmatprep.subr.mxu0 %v218
        %444 = vmatpush1.msra.mxu0 %v217
        %445 = vmatprep.subr.mxu0 %v222
        %446 = vmatpush1.msra.mxu0 %v221
        %447 = vmatprep.subr.mxu0 %v226
        %448 = vmatpush1.msra.mxu0 %v225
        %449 = vmatprep.subr.mxu0 0.0
        %450 = vmatpush1.msra.mxu0 0.0
        %451 = vmatprep.subr.mxu0 0.0
        %452 = vmatpush1.msra.mxu0 0.0
        %453 = vmatprep.subr.mxu0 0.0
        %454 = vmatpush1.msra.mxu0 0.0
        %455 = vmatprep.subr.mxu0 0.0
        %456 = vmatpush1.msra.mxu0 0.0
        %457 = vmatprep.subr.mxu0 0.0
        %458 = vmatpush1.msra.mxu0 0.0
        %459 = vmatprep.subr.mxu0 0.0
        %460 = vmatpush1.msra.mxu0 0.0
        %461 = vmatprep.subr.mxu0 0.0
        %462 = vmatpush1.msra.mxu0 0.0
        %463 = vmatprep.subr.mxu0 0.0
        %464 = vmatpush1.msra.mxu0 0.0
        %465 = vmatprep.subr.mxu0 0.0
        %466 = vmatpush1.msra.mxu0 0.0
        %467 = vmatprep.subr.mxu0 0.0
        %468 = vmatpush1.msra.mxu0 0.0
        %469 = vmatprep.subr.mxu0 0.0
        %470 = vmatpush1.msra.mxu0 0.0
        %471 = vmatprep.subr.mxu0 0.0
        %472 = vmatpush1.msra.mxu0 0.0
        %473 = vmatprep.subr.mxu0 0.0
        %474 = vmatpush1.msra.mxu0 0.0
        %475 = vmatprep.subr.mxu0 0.0
        %476 = vmatpush1.msra.mxu0 0.0
        %477 = vmatprep.subr.mxu0 0.0
        %478 = vmatpush1.msra.mxu0 0.0
        %479 = vmatprep.subr.mxu0 0.0
        %480 = vmatpush1.msra.mxu0 0.0
        %481 = vmatprep.subr.mxu0 0.0
        %482 = vmatpush1.msra.mxu0 0.0
        %483 = vmatprep.subr.mxu0 0.0
        %484 = vmatpush1.msra.mxu0 0.0
        %485 = vmatprep.subr.mxu0 0.0
        %486 = vmatpush1.msra.mxu0 0.0
        %487 = vmatprep.subr.mxu0 0.0
        %488 = vmatpush1.msra.mxu0 0.0
        %489 = vmatprep.subr.mxu0 0.0
        %490 = vmatpush1.msra.mxu0 0.0
        %491 = vmatprep.subr.mxu0 0.0
        %492 = vmatpush1.msra.mxu0 0.0
        %493 = vmatprep.subr.mxu0 0.0
        %494 = vmatpush1.msra.mxu0 0.0
        %495 = vmatprep.subr.mxu0 0.0
        %496 = vmatpush1.msra.mxu0 0.0
        %497 = vmatprep.mubr.f32.mxu0 0.0
        %498 = vmatmul.mubr.f32.gmra.mrb[0].mxu0 %v429
        %v499 = vpop.f32.mrb[0].mxu0
        %v500 = vadd.f32 %v342, %v499
        %v501 = vpop.f32.mrb[0].mxu0
        %v502 = vadd.f32 %v344, %v501
        %503 = vmatprep.mubr.f32.mxu0 0.0
        %504 = vmatmul.mubr.f32.gmra.mrb[0].mxu0 %v431
        %v505 = vpop.f32.mrb[0].mxu0
        %v506 = vadd.f32 %v348, %v505
        %v507 = vpop.f32.mrb[0].mxu0
        %v508 = vadd.f32 %v350, %v507
        %509 = vdwg.mxu0
        %510 = vmatprep.subr.mxu0 %v200
        %511 = vmatpush1.msra.mxu0 %v199
        %512 = vmatprep.subr.mxu0 %v204
        %513 = vmatpush1.msra.mxu0 %v203
        %514 = vmatprep.subr.mxu0 %v208
        %515 = vmatpush1.msra.mxu0 %v207
        %516 = vmatprep.subr.mxu0 %v212
        %517 = vmatpush1.msra.mxu0 %v211
        %518 = vmatprep.subr.mxu0 %v216
        %519 = vmatpush1.msra.mxu0 %v215
        %520 = vmatprep.subr.mxu0 %v220
        %521 = vmatpush1.msra.mxu0 %v219
        %522 = vmatprep.subr.mxu0 %v224
        %523 = vmatpush1.msra.mxu0 %v223
        %524 = vmatprep.subr.mxu0 %v228
        %525 = vmatpush1.msra.mxu0 %v227
        %526 = vmatprep.subr.mxu0 0.0
        %527 = vmatpush1.msra.mxu0 0.0
        %528 = vmatprep.subr.mxu0 0.0
        %529 = vmatpush1.msra.mxu0 0.0
        %530 = vmatprep.subr.mxu0 0.0
        %531 = vmatpush1.msra.mxu0 0.0
        %532 = vmatprep.subr.mxu0 0.0
        %533 = vmatpush1.msra.mxu0 0.0
        %534 = vmatprep.subr.mxu0 0.0
        %535 = vmatpush1.msra.mxu0 0.0
        %536 = vmatprep.subr.mxu0 0.0
        %537 = vmatpush1.msra.mxu0 0.0
        %538 = vmatprep.subr.mxu0 0.0
        %539 = vmatpush1.msra.mxu0 0.0
        %540 = vmatprep.subr.mxu0 0.0
        %541 = vmatpush1.msra.mxu0 0.0
        %542 = vmatprep.subr.mxu0 0.0
        %543 = vmatpush1.msra.mxu0 0.0
        %544 = vmatprep.subr.mxu0 0.0
        %545 = vmatpush1.msra.mxu0 0.0
        %546 = vmatprep.subr.mxu0 0.0
        %547 = vmatpush1.msra.mxu0 0.0
        %548 = vmatprep.subr.mxu0 0.0
        %549 = vmatpush1.msra.mxu0 0.0
        %550 = vmatprep.subr.mxu0 0.0
        %551 = vmatpush1.msra.mxu0 0.0
        %552 = vmatprep.subr.mxu0 0.0
        %553 = vmatpush1.msra.mxu0 0.0
        %554 = vmatprep.subr.mxu0 0.0
        %555 = vmatpush1.msra.mxu0 0.0
        %556 = vmatprep.subr.mxu0 0.0
        %557 = vmatpush1.msra.mxu0 0.0
        %558 = vmatprep.subr.mxu0 0.0
        %559 = vmatpush1.msra.mxu0 0.0
        %560 = vmatprep.subr.mxu0 0.0
        %561 = vmatpush1.msra.mxu0 0.0
        %562 = vmatprep.subr.mxu0 0.0
        %563 = vmatpush1.msra.mxu0 0.0
        %564 = vmatprep.subr.mxu0 0.0
        %565 = vmatpush1.msra.mxu0 0.0
        %566 = vmatprep.subr.mxu0 0.0
        %567 = vmatpush1.msra.mxu0 0.0
        %568 = vmatprep.subr.mxu0 0.0
        %569 = vmatpush1.msra.mxu0 0.0
        %570 = vmatprep.subr.mxu0 0.0
        %571 = vmatpush1.msra.mxu0 0.0
        %572 = vmatprep.subr.mxu0 0.0
        %573 = vmatpush1.msra.mxu0 0.0
        %574 = vmatprep.mubr.f32.mxu0 0.0
        %575 = vmatmul.mubr.f32.gmra.mrb[0].mxu0 %v429
        %v576 = vpop.f32.mrb[0].mxu0
        %v577 = vadd.f32 %v419, %v576
        %v578 = vpop.f32.mrb[0].mxu0
        %v579 = vadd.f32 %v421, %v578
        %580 = vmatprep.mubr.f32.mxu0 0.0
        %581 = vmatmul.mubr.f32.gmra.mrb[0].mxu0 %v431
        %v582 = vpop.f32.mrb[0].mxu0
        %v583 = vadd.f32 %v425, %v582
        %v584 = vpop.f32.mrb[0].mxu0
        %v585 = vadd.f32 %v427, %v584
        %586 = vdwg.mxu0
        %v587 = vld [vmem:[#allocation5 + $0x200] sm:$0xff]
        %v588 = vld [vmem:[#allocation5 + $0x208] sm:$0xff]
        %v589 = vld [vmem:[#allocation5 + $0x210] sm:$0xff]
        %v590 = vld [vmem:[#allocation5 + $0x218] sm:$0xff]
        %v591 = vld [vmem:[#allocation5 + $0x220] sm:$0xff]
        %v592 = vld [vmem:[#allocation5 + $0x228] sm:$0xff]
        %v593 = vld [vmem:[#allocation5 + $0x230] sm:$0xff]
        %v594 = vld [vmem:[#allocation5 + $0x238] sm:$0xff]
        %v595 = vld [vmem:[#allocation5 + $0x240] sm:$0xff]
        %v596 = vld [vmem:[#allocation5 + $0x248] sm:$0xff]
        %v597 = vld [vmem:[#allocation5 + $0x250] sm:$0xff]
        %v598 = vld [vmem:[#allocation5 + $0x258] sm:$0xff]
        %v599 = vld [vmem:[#allocation5 + $0x260] sm:$0xff]
        %v600 = vld [vmem:[#allocation5 + $0x268] sm:$0xff]
        %v601 = vld [vmem:[#allocation5 + $0x270] sm:$0xff]
        %v602 = vld [vmem:[#allocation5 + $0x278] sm:$0xff]
        %v603 = vld [vmem:[#allocation5 + $0x280] sm:$0xff]
        %v604 = vld [vmem:[#allocation5 + $0x288] sm:$0xff]
        %v605 = vld [vmem:[#allocation5 + $0x290] sm:$0xff]
        %v606 = vld [vmem:[#allocation5 + $0x298] sm:$0xff]
        %v607 = vld [vmem:[#allocation5 + $0x2a0] sm:$0xff]
        %v608 = vld [vmem:[#allocation5 + $0x2a8] sm:$0xff]
        %v609 = vld [vmem:[#allocation5 + $0x2b0] sm:$0xff]
        %v610 = vld [vmem:[#allocation5 + $0x2b8] sm:$0xff]
        %v611 = vld [vmem:[#allocation5 + $0x2c0] sm:$0xff]
        %v612 = vld [vmem:[#allocation5 + $0x2c8] sm:$0xff]
        %v613 = vld [vmem:[#allocation5 + $0x2d0] sm:$0xff]
        %v614 = vld [vmem:[#allocation5 + $0x2d8] sm:$0xff]
        %v615 = vld [vmem:[#allocation5 + $0x2e0] sm:$0xff]
        %v616 = vld [vmem:[#allocation5 + $0x2e8] sm:$0xff]
        %v617 = vld [vmem:[#allocation5 + $0x2f0] sm:$0xff]
        %v618 = vld [vmem:[#allocation5 + $0x2f8] sm:$0xff]
        %vm619 = vcmask 1045504
        %v620 = vrot.slane %v194, 2
        %v621 = vrot.slane %v195, 2
        %v622 = vsel %vm619, %v620, %v621
        %v623 = vrot.slane %v196, 2
        %v624 = vsel %vm619, %v621, %v623
        %v625 = vsel %vm270, %v622, 0
        %v627 = vsel %vm270, %v624, 0
        %629 = vmatprep.subr.mxu0 %v588
        %630 = vmatpush1.msra.mxu0 %v587
        %631 = vmatprep.subr.mxu0 %v592
        %632 = vmatpush1.msra.mxu0 %v591
        %633 = vmatprep.subr.mxu0 %v596
        %634 = vmatpush1.msra.mxu0 %v595
        %635 = vmatprep.subr.mxu0 %v600
        %636 = vmatpush1.msra.mxu0 %v599
        %637 = vmatprep.subr.mxu0 %v604
        %638 = vmatpush1.msra.mxu0 %v603
        %639 = vmatprep.subr.mxu0 %v608
        %640 = vmatpush1.msra.mxu0 %v607
        %641 = vmatprep.subr.mxu0 %v612
        %642 = vmatpush1.msra.mxu0 %v611
        %643 = vmatprep.subr.mxu0 %v616
        %644 = vmatpush1.msra.mxu0 %v615
        %645 = vmatprep.subr.mxu0 0.0
        %646 = vmatpush1.msra.mxu0 0.0
        %647 = vmatprep.subr.mxu0 0.0
        %648 = vmatpush1.msra.mxu0 0.0
        %649 = vmatprep.subr.mxu0 0.0
        %650 = vmatpush1.msra.mxu0 0.0
        %651 = vmatprep.subr.mxu0 0.0
        %652 = vmatpush1.msra.mxu0 0.0
        %653 = vmatprep.subr.mxu0 0.0
        %654 = vmatpush1.msra.mxu0 0.0
        %655 = vmatprep.subr.mxu0 0.0
        %656 = vmatpush1.msra.mxu0 0.0
        %657 = vmatprep.subr.mxu0 0.0
        %658 = vmatpush1.msra.mxu0 0.0
        %659 = vmatprep.subr.mxu0 0.0
        %660 = vmatpush1.msra.mxu0 0.0
        %661 = vmatprep.subr.mxu0 0.0
        %662 = vmatpush1.msra.mxu0 0.0
        %663 = vmatprep.subr.mxu0 0.0
        %664 = vmatpush1.msra.mxu0 0.0
        %665 = vmatprep.subr.mxu0 0.0
        %666 = vmatpush1.msra.mxu0 0.0
        %667 = vmatprep.subr.mxu0 0.0
        %668 = vmatpush1.msra.mxu0 0.0
        %669 = vmatprep.subr.mxu0 0.0
        %670 = vmatpush1.msra.mxu0 0.0
        %671 = vmatprep.subr.mxu0 0.0
        %672 = vmatpush1.msra.mxu0 0.0
        %673 = vmatprep.subr.mxu0 0.0
        %674 = vmatpush1.msra.mxu0 0.0
        %675 = vmatprep.subr.mxu0 0.0
        %676 = vmatpush1.msra.mxu0 0.0
        %677 = vmatprep.subr.mxu0 0.0
        %678 = vmatpush1.msra.mxu0 0.0
        %679 = vmatprep.subr.mxu0 0.0
        %680 = vmatpush1.msra.mxu0 0.0
        %681 = vmatprep.subr.mxu0 0.0
        %682 = vmatpush1.msra.mxu0 0.0
        %683 = vmatprep.subr.mxu0 0.0
        %684 = vmatpush1.msra.mxu0 0.0
        %685 = vmatprep.subr.mxu0 0.0
        %686 = vmatpush1.msra.mxu0 0.0
        %687 = vmatprep.subr.mxu0 0.0
        %688 = vmatpush1.msra.mxu0 0.0
        %689 = vmatprep.subr.mxu0 0.0
        %690 = vmatpush1.msra.mxu0 0.0
        %691 = vmatprep.subr.mxu0 0.0
        %692 = vmatpush1.msra.mxu0 0.0
        %693 = vmatprep.mubr.f32.mxu0 0.0
        %694 = vmatmul.mubr.f32.gmra.mrb[0].mxu0 %v625
        %v695 = vpop.f32.mrb[0].mxu0
        %v696 = vadd.f32 0.0, %v695
        %v697 = vpop.f32.mrb[0].mxu0
        %v698 = vadd.f32 0.0, %v697
        %699 = vmatprep.mubr.f32.mxu0 0.0
        %700 = vmatmul.mubr.f32.gmra.mrb[0].mxu0 %v627
        %v701 = vpop.f32.mrb[0].mxu0
        %v702 = vadd.f32 0.0, %v701
        %v703 = vpop.f32.mrb[0].mxu0
        %v704 = vadd.f32 0.0, %v703
        %705 = vdwg.mxu0
        %706 = vmatprep.subr.mxu0 %v590
        %707 = vmatpush1.msra.mxu0 %v589
        %708 = vmatprep.subr.mxu0 %v594
        %709 = vmatpush1.msra.mxu0 %v593
        %710 = vmatprep.subr.mxu0 %v598
        %711 = vmatpush1.msra.mxu0 %v597
        %712 = vmatprep.subr.mxu0 %v602
        %713 = vmatpush1.msra.mxu0 %v601
        %714 = vmatprep.subr.mxu0 %v606
        %715 = vmatpush1.msra.mxu0 %v605
        %716 = vmatprep.subr.mxu0 %v610
        %717 = vmatpush1.msra.mxu0 %v609
        %718 = vmatprep.subr.mxu0 %v614
        %719 = vmatpush1.msra.mxu0 %v613
        %720 = vmatprep.subr.mxu0 %v618
        %721 = vmatpush1.msra.mxu0 %v617
        %722 = vmatprep.subr.mxu0 0.0
        %723 = vmatpush1.msra.mxu0 0.0
        %724 = vmatprep.subr.mxu0 0.0
        %725 = vmatpush1.msra.mxu0 0.0
        %726 = vmatprep.subr.mxu0 0.0
        %727 = vmatpush1.msra.mxu0 0.0
        %728 = vmatprep.subr.mxu0 0.0
        %729 = vmatpush1.msra.mxu0 0.0
        %730 = vmatprep.subr.mxu0 0.0
        %731 = vmatpush1.msra.mxu0 0.0
        %732 = vmatprep.subr.mxu0 0.0
        %733 = vmatpush1.msra.mxu0 0.0
        %734 = vmatprep.subr.mxu0 0.0
        %735 = vmatpush1.msra.mxu0 0.0
        %736 = vmatprep.subr.mxu0 0.0
        %737 = vmatpush1.msra.mxu0 0.0
        %738 = vmatprep.subr.mxu0 0.0
        %739 = vmatpush1.msra.mxu0 0.0
        %740 = vmatprep.subr.mxu0 0.0
        %741 = vmatpush1.msra.mxu0 0.0
        %742 = vmatprep.subr.mxu0 0.0
        %743 = vmatpush1.msra.mxu0 0.0
        %744 = vmatprep.subr.mxu0 0.0
        %745 = vmatpush1.msra.mxu0 0.0
        %746 = vmatprep.subr.mxu0 0.0
        %747 = vmatpush1.msra.mxu0 0.0
        %748 = vmatprep.subr.mxu0 0.0
        %749 = vmatpush1.msra.mxu0 0.0
        %750 = vmatprep.subr.mxu0 0.0
        %751 = vmatpush1.msra.mxu0 0.0
        %752 = vmatprep.subr.mxu0 0.0
        %753 = vmatpush1.msra.mxu0 0.0
        %754 = vmatprep.subr.mxu0 0.0
        %755 = vmatpush1.msra.mxu0 0.0
        %756 = vmatprep.subr.mxu0 0.0
        %757 = vmatpush1.msra.mxu0 0.0
        %758 = vmatprep.subr.mxu0 0.0
        %759 = vmatpush1.msra.mxu0 0.0
        %760 = vmatprep.subr.mxu0 0.0
        %761 = vmatpush1.msra.mxu0 0.0
        %762 = vmatprep.subr.mxu0 0.0
        %763 = vmatpush1.msra.mxu0 0.0
        %764 = vmatprep.subr.mxu0 0.0
        %765 = vmatpush1.msra.mxu0 0.0
        %766 = vmatprep.subr.mxu0 0.0
        %767 = vmatpush1.msra.mxu0 0.0
        %768 = vmatprep.subr.mxu0 0.0
        %769 = vmatpush1.msra.mxu0 0.0
        %770 = vmatprep.mubr.f32.mxu0 0.0
        %771 = vmatmul.mubr.f32.gmra.mrb[0].mxu0 %v625
        %v772 = vpop.f32.mrb[0].mxu0
        %v773 = vadd.f32 0.0, %v772
        %v774 = vpop.f32.mrb[0].mxu0
        %v775 = vadd.f32 0.0, %v774
        %776 = vmatprep.mubr.f32.mxu0 0.0
        %777 = vmatmul.mubr.f32.gmra.mrb[0].mxu0 %v627
        %v778 = vpop.f32.mrb[0].mxu0
        %v779 = vadd.f32 0.0, %v778
        %v780 = vpop.f32.mrb[0].mxu0
        %v781 = vadd.f32 0.0, %v780
        %782 = vdwg.mxu0
        %v783 = vadd.f32 %v500, %v696
        %v784 = vadd.f32 %v502, %v698
        %v785 = vadd.f32 %v577, %v773
        %v786 = vadd.f32 %v579, %v775
        %v787 = vadd.f32 %v506, %v702
        %v788 = vadd.f32 %v508, %v704
        %v789 = vadd.f32 %v583, %v779
        %v790 = vadd.f32 %v585, %v781
        %v791 = vld [vmem:[#allocation5 + $0x300] sm:$0xff]
        %v792 = vld [vmem:[#allocation5 + $0x308] sm:$0xff]
        %v793 = vld [vmem:[#allocation5 + $0x310] sm:$0xff]
        %v794 = vld [vmem:[#allocation5 + $0x318] sm:$0xff]
        %v795 = vld [vmem:[#allocation5 + $0x320] sm:$0xff]
        %v796 = vld [vmem:[#allocation5 + $0x328] sm:$0xff]
        %v797 = vld [vmem:[#allocation5 + $0x330] sm:$0xff]
        %v798 = vld [vmem:[#allocation5 + $0x338] sm:$0xff]
        %v799 = vld [vmem:[#allocation5 + $0x340] sm:$0xff]
        %v800 = vld [vmem:[#allocation5 + $0x348] sm:$0xff]
        %v801 = vld [vmem:[#allocation5 + $0x350] sm:$0xff]
        %v802 = vld [vmem:[#allocation5 + $0x358] sm:$0xff]
        %v803 = vld [vmem:[#allocation5 + $0x360] sm:$0xff]
        %v804 = vld [vmem:[#allocation5 + $0x368] sm:$0xff]
        %v805 = vld [vmem:[#allocation5 + $0x370] sm:$0xff]
        %v806 = vld [vmem:[#allocation5 + $0x378] sm:$0xff]
        %v807 = vld [vmem:[#allocation5 + $0x380] sm:$0xff]
        %v808 = vld [vmem:[#allocation5 + $0x388] sm:$0xff]
        %v809 = vld [vmem:[#allocation5 + $0x390] sm:$0xff]
        %v810 = vld [vmem:[#allocation5 + $0x398] sm:$0xff]
        %v811 = vld [vmem:[#allocation5 + $0x3a0] sm:$0xff]
        %v812 = vld [vmem:[#allocation5 + $0x3a8] sm:$0xff]
        %v813 = vld [vmem:[#allocation5 + $0x3b0] sm:$0xff]
        %v814 = vld [vmem:[#allocation5 + $0x3b8] sm:$0xff]
        %v815 = vld [vmem:[#allocation5 + $0x3c0] sm:$0xff]
        %v816 = vld [vmem:[#allocation5 + $0x3c8] sm:$0xff]
        %v817 = vld [vmem:[#allocation5 + $0x3d0] sm:$0xff]
        %v818 = vld [vmem:[#allocation5 + $0x3d8] sm:$0xff]
        %v819 = vld [vmem:[#allocation5 + $0x3e0] sm:$0xff]
        %v820 = vld [vmem:[#allocation5 + $0x3e8] sm:$0xff]
        %v821 = vld [vmem:[#allocation5 + $0x3f0] sm:$0xff]
        %v822 = vld [vmem:[#allocation5 + $0x3f8] sm:$0xff]
        %vm823 = vcmask 1044480
        %v824 = vrot.slane %v194, 3
        %v825 = vrot.slane %v195, 3
        %v826 = vsel %vm823, %v824, %v825
        %v827 = vrot.slane %v196, 3
        %v828 = vsel %vm823, %v825, %v827
        %v829 = vsel %vm270, %v826, 0
        %v831 = vsel %vm270, %v828, 0
        %833 = vmatprep.subr.mxu0 %v792
        %834 = vmatpush1.msra.mxu0 %v791
        %835 = vmatprep.subr.mxu0 %v796
        %836 = vmatpush1.msra.mxu0 %v795
        %837 = vmatprep.subr.mxu0 %v800
        %838 = vmatpush1.msra.mxu0 %v799
        %839 = vmatprep.subr.mxu0 %v804
        %840 = vmatpush1.msra.mxu0 %v803
        %841 = vmatprep.subr.mxu0 %v808
        %842 = vmatpush1.msra.mxu0 %v807
        %843 = vmatprep.subr.mxu0 %v812
        %844 = vmatpush1.msra.mxu0 %v811
        %845 = vmatprep.subr.mxu0 %v816
        %846 = vmatpush1.msra.mxu0 %v815
        %847 = vmatprep.subr.mxu0 %v820
        %848 = vmatpush1.msra.mxu0 %v819
        %849 = vmatprep.subr.mxu0 0.0
        %850 = vmatpush1.msra.mxu0 0.0
        %851 = vmatprep.subr.mxu0 0.0
        %852 = vmatpush1.msra.mxu0 0.0
        %853 = vmatprep.subr.mxu0 0.0
        %854 = vmatpush1.msra.mxu0 0.0
        %855 = vmatprep.subr.mxu0 0.0
        %856 = vmatpush1.msra.mxu0 0.0
        %857 = vmatprep.subr.mxu0 0.0
        %858 = vmatpush1.msra.mxu0 0.0
        %859 = vmatprep.subr.mxu0 0.0
        %860 = vmatpush1.msra.mxu0 0.0
        %861 = vmatprep.subr.mxu0 0.0
        %862 = vmatpush1.msra.mxu0 0.0
        %863 = vmatprep.subr.mxu0 0.0
        %864 = vmatpush1.msra.mxu0 0.0
        %865 = vmatprep.subr.mxu0 0.0
        %866 = vmatpush1.msra.mxu0 0.0
        %867 = vmatprep.subr.mxu0 0.0
        %868 = vmatpush1.msra.mxu0 0.0
        %869 = vmatprep.subr.mxu0 0.0
        %870 = vmatpush1.msra.mxu0 0.0
        %871 = vmatprep.subr.mxu0 0.0
        %872 = vmatpush1.msra.mxu0 0.0
        %873 = vmatprep.subr.mxu0 0.0
        %874 = vmatpush1.msra.mxu0 0.0
        %875 = vmatprep.subr.mxu0 0.0
        %876 = vmatpush1.msra.mxu0 0.0
        %877 = vmatprep.subr.mxu0 0.0
        %878 = vmatpush1.msra.mxu0 0.0
        %879 = vmatprep.subr.mxu0 0.0
        %880 = vmatpush1.msra.mxu0 0.0
        %881 = vmatprep.subr.mxu0 0.0
        %882 = vmatpush1.msra.mxu0 0.0
        %883 = vmatprep.subr.mxu0 0.0
        %884 = vmatpush1.msra.mxu0 0.0
        %885 = vmatprep.subr.mxu0 0.0
        %886 = vmatpush1.msra.mxu0 0.0
        %887 = vmatprep.subr.mxu0 0.0
        %888 = vmatpush1.msra.mxu0 0.0
        %889 = vmatprep.subr.mxu0 0.0
        %890 = vmatpush1.msra.mxu0 0.0
        %891 = vmatprep.subr.mxu0 0.0
        %892 = vmatpush1.msra.mxu0 0.0
        %893 = vmatprep.subr.mxu0 0.0
        %894 = vmatpush1.msra.mxu0 0.0
        %895 = vmatprep.subr.mxu0 0.0
        %896 = vmatpush1.msra.mxu0 0.0
        %897 = vmatprep.mubr.f32.mxu0 0.0
        %898 = vmatmul.mubr.f32.gmra.mrb[0].mxu0 %v829
        %v899 = vpop.f32.mrb[0].mxu0
        %v900 = vadd.f32 0.0, %v899
        %v901 = vpop.f32.mrb[0].mxu0
        %v902 = vadd.f32 0.0, %v901
        %903 = vmatprep.mubr.f32.mxu0 0.0
        %904 = vmatmul.mubr.f32.gmra.mrb[0].mxu0 %v831
        %v905 = vpop.f32.mrb[0].mxu0
        %v906 = vadd.f32 0.0, %v905
        %v907 = vpop.f32.mrb[0].mxu0
        %v908 = vadd.f32 0.0, %v907
        %909 = vdwg.mxu0
        %910 = vmatprep.subr.mxu0 %v794
        %911 = vmatpush1.msra.mxu0 %v793
        %912 = vmatprep.subr.mxu0 %v798
        %913 = vmatpush1.msra.mxu0 %v797
        %914 = vmatprep.subr.mxu0 %v802
        %915 = vmatpush1.msra.mxu0 %v801
        %916 = vmatprep.subr.mxu0 %v806
        %917 = vmatpush1.msra.mxu0 %v805
        %918 = vmatprep.subr.mxu0 %v810
        %919 = vmatpush1.msra.mxu0 %v809
        %920 = vmatprep.subr.mxu0 %v814
        %921 = vmatpush1.msra.mxu0 %v813
        %922 = vmatprep.subr.mxu0 %v818
        %923 = vmatpush1.msra.mxu0 %v817
        %924 = vmatprep.subr.mxu0 %v822
        %925 = vmatpush1.msra.mxu0 %v821
        %926 = vmatprep.subr.mxu0 0.0
        %927 = vmatpush1.msra.mxu0 0.0
        %928 = vmatprep.subr.mxu0 0.0
        %929 = vmatpush1.msra.mxu0 0.0
        %930 = vmatprep.subr.mxu0 0.0
        %931 = vmatpush1.msra.mxu0 0.0
        %932 = vmatprep.subr.mxu0 0.0
        %933 = vmatpush1.msra.mxu0 0.0
        %934 = vmatprep.subr.mxu0 0.0
        %935 = vmatpush1.msra.mxu0 0.0
        %936 = vmatprep.subr.mxu0 0.0
        %937 = vmatpush1.msra.mxu0 0.0
        %938 = vmatprep.subr.mxu0 0.0
        %939 = vmatpush1.msra.mxu0 0.0
        %940 = vmatprep.subr.mxu0 0.0
        %941 = vmatpush1.msra.mxu0 0.0
        %942 = vmatprep.subr.mxu0 0.0
        %943 = vmatpush1.msra.mxu0 0.0
        %944 = vmatprep.subr.mxu0 0.0
        %945 = vmatpush1.msra.mxu0 0.0
        %946 = vmatprep.subr.mxu0 0.0
        %947 = vmatpush1.msra.mxu0 0.0
        %948 = vmatprep.subr.mxu0 0.0
        %949 = vmatpush1.msra.mxu0 0.0
        %950 = vmatprep.subr.mxu0 0.0
        %951 = vmatpush1.msra.mxu0 0.0
        %952 = vmatprep.subr.mxu0 0.0
        %953 = vmatpush1.msra.mxu0 0.0
        %954 = vmatprep.subr.mxu0 0.0
        %955 = vmatpush1.msra.mxu0 0.0
        %956 = vmatprep.subr.mxu0 0.0
        %957 = vmatpush1.msra.mxu0 0.0
        %958 = vmatprep.subr.mxu0 0.0
        %959 = vmatpush1.msra.mxu0 0.0
        %960 = vmatprep.subr.mxu0 0.0
        %961 = vmatpush1.msra.mxu0 0.0
        %962 = vmatprep.subr.mxu0 0.0
        %963 = vmatpush1.msra.mxu0 0.0
        %964 = vmatprep.subr.mxu0 0.0
        %965 = vmatpush1.msra.mxu0 0.0
        %966 = vmatprep.subr.mxu0 0.0
        %967 = vmatpush1.msra.mxu0 0.0
        %968 = vmatprep.subr.mxu0 0.0
        %969 = vmatpush1.msra.mxu0 0.0
        %970 = vmatprep.subr.mxu0 0.0
        %971 = vmatpush1.msra.mxu0 0.0
        %972 = vmatprep.subr.mxu0 0.0
        %973 = vmatpush1.msra.mxu0 0.0
        %974 = vmatprep.mubr.f32.mxu0 0.0
        %975 = vmatmul.mubr.f32.gmra.mrb[0].mxu0 %v829
        %v976 = vpop.f32.mrb[0].mxu0
        %v977 = vadd.f32 0.0, %v976
        %v978 = vpop.f32.mrb[0].mxu0
        %v979 = vadd.f32 0.0, %v978
        %980 = vmatprep.mubr.f32.mxu0 0.0
        %981 = vmatmul.mubr.f32.gmra.mrb[0].mxu0 %v831
        %v982 = vpop.f32.mrb[0].mxu0
        %v983 = vadd.f32 0.0, %v982
        %v984 = vpop.f32.mrb[0].mxu0
        %v985 = vadd.f32 0.0, %v984
        %986 = vdwg.mxu0
        %v987 = vadd.f32 %v783, %v900
        %v988 = vadd.f32 %v784, %v902
        %v989 = vadd.f32 %v785, %v977
        %v990 = vadd.f32 %v786, %v979
        %v991 = vadd.f32 %v787, %v906
        %v992 = vadd.f32 %v788, %v908
        %v993 = vadd.f32 %v789, %v983
        %v994 = vadd.f32 %v790, %v985
        %v995 = vmul.f32 %v987, %v987
        %v996 = vmul.f32 %v988, %v988
        %v997 = vmul.f32 %v991, %v991
        %v998 = vmul.f32 %v992, %v992
        %v999 = vmul.f32 %v989, %v989
        %v1000 = vmul.f32 %v990, %v990
        %v1001 = vmul.f32 %v993, %v993
        %v1002 = vmul.f32 %v994, %v994
        %v1003 = vadd.f32 %v995, %v999
        %v1004 = vadd.f32 %v996, %v1000
        %v1005 = vadd.f32 %v997, %v1001
        %v1006 = vadd.f32 %v998, %v1002
        %v1007 = vrsqrt.pop %v1003
        %v1008 = vmul.f32 %v1003, %v1007
        %vm1009 = vcmp.eq.f32.partialorder %v1003, inf
        %v1010 = vsel %vm1009, %v1003, %v1008
        %vm1011 = vcmp.eq.f32.partialorder %v1003, 0.0
        %v1012 = vand.u32 %v1003, 2147483648
        %v1013 = vsel %vm1011, %v1012, %v1010
        %v1014 = vrsqrt.pop %v1004
        %v1015 = vmul.f32 %v1004, %v1014
        %vm1016 = vcmp.eq.f32.partialorder %v1004, inf
        %v1017 = vsel %vm1016, %v1004, %v1015
        %vm1018 = vcmp.eq.f32.partialorder %v1004, 0.0
        %v1019 = vand.u32 %v1004, 2147483648
        %v1020 = vsel %vm1018, %v1019, %v1017
        %v1021 = vrsqrt.pop %v1005
        %v1022 = vmul.f32 %v1005, %v1021
        %vm1023 = vcmp.eq.f32.partialorder %v1005, inf
        %v1024 = vsel %vm1023, %v1005, %v1022
        %vm1025 = vcmp.eq.f32.partialorder %v1005, 0.0
        %v1026 = vand.u32 %v1005, 2147483648
        %v1027 = vsel %vm1025, %v1026, %v1024
        %v1028 = vrsqrt.pop %v1006
        %v1029 = vmul.f32 %v1006, %v1028
        %vm1030 = vcmp.eq.f32.partialorder %v1006, inf
        %v1031 = vsel %vm1030, %v1006, %v1029
        %vm1032 = vcmp.eq.f32.partialorder %v1006, 0.0
        %v1033 = vand.u32 %v1006, 2147483648
        %v1034 = vsel %vm1032, %v1033, %v1031
        %1035 = vst [vmem:[%s190] sm:$0xff] %v1013
        %1036 = vst [vmem:[%s190 + $0x8] sm:$0xff] %v1020
        %1037 = vst [vmem:[%s190 + $0x10] sm:$0xff] %v1027
        %1038 = vst [vmem:[%s190 + $0x18] sm:$0xff] %v1034
        %s1039 = sand.u32 %s89, 1
        %s1040 = scalar_lea.sflag [#allocation4], %s1039
        %s1041 = sand.u32 %s89, 1
        %s1042 = smul.addr %s1041, 32
        %s1043 = scalar_lea.vmem [#allocation7], %s1042
        // Predicated region
        $region37: #{tpu_custom_call.1} parent=27 // pred_check
          %p1044 = pneg %p99
        $region38: #{tpu_custom_call.1} parent=27 // pred_check_branch
          %1046 = sbr.rel (%p1044) target = $region40
        $region39: #{tpu_custom_call.1} parent=27 // pred_region
          %s1047 = smul.u32 2, %s25
          %s1049 = ssub.s32 512, 512
          %1050 = vsyncadd %s1040, %s1049
          %s1051 = smul.addr %s1047, 2
          %s1052 = smul.addr %s24, 4
          %s1053 = sadd.s32 %s1051, %s1052
          %s1054 = smul.addr %s1053, 128
          %s1055 = scalar_lea.hbm %s2, %s1054
          %s1056 = sshll.u32 %s1043, 4
          %s1057 = int_to_ptr.vmem [resolvable:$true] %s1056
          %1062 = dma.vmem_to_hbm [thread:$0]  %s1057, 512, %s1055, %s1040, 256, 256, 16
        $region40: #{tpu_custom_call.1} parent=27 // pred_fallthru
          _
      $region28: #{tpu_custom_call.1} parent=5 // pred_fallthru
        _
      %p1063 = scmp.le.s32.totalorder 2, %s15
      // Predicated region
      $region41: #{tpu_custom_call.1} parent=5 // pred_check
        %p1064 = pneg %p1063
      $region42: #{tpu_custom_call.1} parent=5 // pred_check_branch
        %1066 = sbr.rel (%p1064) target = $region44
      $region43: #{tpu_custom_call.1} parent=5 // pred_region
        %s1067 = ssub.s32 %s15, 2
        // Predicated region
        $region45: #{tpu_custom_call.1} parent=43 // pred_check
          %p1068 = pneg %p105
        $region46: #{tpu_custom_call.1} parent=43 // pred_check_branch
          %1070 = sbr.rel (%p1068) target = $region48
        $region47: #{tpu_custom_call.1} parent=43 // pred_region
          %s1071 = sand.u32 %s90, 1
          %s1072 = scalar_lea.sflag [#allocation4], %s1071
          %s1073 = sand.u32 %s90, 1
          %s1074 = smul.addr %s1073, 32
          %s1075 = scalar_lea.vmem [#allocation7], %s1074
          %1076 = dma.done %s1072, 512
        $region48: #{tpu_custom_call.1} parent=43 // pred_fallthru
          _
      $region44: #{tpu_custom_call.1} parent=5 // pred_fallthru
        _
    $region6: #{tpu_custom_call.1} parent=1 // loop_footer
      %s19 = sadd.s32 1, %s15
    $region7: #{tpu_custom_call.1} parent=1 // loop_footer_branch
      %14 = sbr.rel target = $region3
    $region8: #{tpu_custom_call.1} parent=1 // loop_exit
      _
    %1077 = vsyncpa [#allocation3], 1
    %s1078 = scalar_lea.sflag [#allocation3], 1
    %1079 = vsyncpa %s1078, 1
    %1080 = vsyncpa [#allocation6], 1
    %1081 = vsyncpa [#allocation4], 1
    %s1082 = scalar_lea.sflag [#allocation4], 1
    %1083 = vsyncpa %s1082, 1

</llo_original>
